<compile_context>
chip_gen: v7x
topology: tpu7x:2x2x1
jax: 0.10.0
libtpu: 0.0.40
codegen_flags: <defaults>
</compile_context>

<pallas_src>
import functools
import math

import jax
import jax.numpy as jnp
from jax.experimental import pallas as pl
from jax.experimental.pallas import tpu as pltpu

_INV_SQRT2 = 1.0 / math.sqrt(2.0)
_LN_EPS = 1e-5
_MIB = 1024 * 1024


# ----------------------------------------------------------------------------
# Generation-gated sizing helpers
# ----------------------------------------------------------------------------
def _vmem_capacity_bytes():
    try:
        return int(pltpu.get_tpu_info().vmem_capacity_bytes)
    except Exception:
        return 64 * _MIB  # conservative (v7x-sized) fallback


def _activation_budget_bytes():
    # Per-stream activation budget: ~cap/16 (8 MiB on 128-MiB v5e/v6e parts,
    # 4 MiB on 64-MiB v7x), floor 2 MiB.
    return max(2 * _MIB, min(8 * _MIB, _vmem_capacity_bytes() // 16))


def _compiler_params(dims):
    cap = _vmem_capacity_bytes()
    limit = max(16 * _MIB, min(cap // 2, 96 * _MIB))
    return pltpu.CompilerParams(dimension_semantics=dims, vmem_limit_bytes=limit)


def _choose_tile_rows(n, *, bytes_per_row, unit=128, cap_rows=2048):
    """Rows per block: VMEM-budgeted, 128-row aligned, capped at 2048."""
    if n <= unit:
        return n
    budget = _activation_budget_bytes()
    t = min(n, cap_rows, max(unit, budget // max(bytes_per_row, 1)))
    if t >= n:
        return n
    return max(unit, (t // unit) * unit)


def _ln_gelu(y, gamma, beta):
    """LayerNorm (last dim, eps=1e-5, biased var) then exact (erf) GELU, f32."""
    mean = jnp.mean(y, axis=-1, keepdims=True)
    var = jnp.mean((y - mean) ** 2, axis=-1, keepdims=True)
    yhat = (y - mean) * jax.lax.rsqrt(var + _LN_EPS)
    yhat = yhat * gamma + beta
    return 0.5 * yhat * (1.0 + jax.lax.erf(yhat * _INV_SQRT2))


# ----------------------------------------------------------------------------
# Kernel 1: fused key -> [value | query] projection, tiled over N
#   K   = LN/GELU(x  @ W_key + b_key)          (stays in VMEM, never hits HBM)
#   y   =            K @ [W_v | W_q] + [b_v|b_q]
#   V,Q = per-half LN/GELU(y)                  (stored bf16)
# ----------------------------------------------------------------------------
def _proj_fused_kernel(x_ref, wk_ref, bk_ref, gk_ref, btk_ref,
                       wvq_ref, bvq_ref, gvq_ref, btvq_ref,
                       v_ref, q_ref):
    x = x_ref[...].astype(jnp.bfloat16)                      # bf16 MXU operand
    k = jnp.dot(x, wk_ref[...], preferred_element_type=jnp.float32) + bk_ref[...]
    k = _ln_gelu(k, gk_ref[...], btk_ref[...])               # f32 VPU/EUP math
    y = jnp.dot(k.astype(jnp.bfloat16), wvq_ref[...],
                preferred_element_type=jnp.float32) + bvq_ref[...]
    d = v_ref.shape[-1]
    v_ref[...] = _ln_gelu(y[:, :d], gvq_ref[:, :d], btvq_ref[:, :d]).astype(v_ref.dtype)
    q_ref[...] = _ln_gelu(y[:, d:], gvq_ref[:, d:], btvq_ref[:, d:]).astype(q_ref.dtype)


def _fused_projection(x, prep, *, tile=None):
    n, d_in = x.shape
    d2 = prep["vq_w"].shape[1]
    d = d2 // 2
    if tile is None:
        # bytes/row of pipelined activation traffic: f32 x + bf16 V + bf16 Q
        tile = _choose_tile_rows(n, bytes_per_row=4 * d_in + 2 * d2)
    grid = (pl.cdiv(n, tile),)
    row_d = pl.BlockSpec((1, d_in), lambda i: (0, 0))
    row_d2 = pl.BlockSpec((1, d2), lambda i: (0, 0))
    out_spec = pl.BlockSpec((tile, d), lambda i: (i, 0))
    cost = pl.CostEstimate(
        flops=int(2 * n * d_in * d_in + 2 * n * d_in * d2),
        transcendentals=int(3 * n * d_in),
        bytes_accessed=int(4 * n * d_in + 2 * (d_in * d_in + d_in * d2) + 2 * 2 * n * d),
    )
    return pl.pallas_call(
        _proj_fused_kernel,
        out_shape=(jax.ShapeDtypeStruct((n, d), jnp.bfloat16),
                   jax.ShapeDtypeStruct((n, d), jnp.bfloat16)),
        grid=grid,
        in_specs=[
            pl.BlockSpec((tile, d_in), lambda i: (i, 0)),     # x tile
            pl.BlockSpec((d_in, d_in), lambda i: (0, 0)),     # W_key (bf16, resident)
            row_d, row_d, row_d,                              # b / gamma / beta (key)
            pl.BlockSpec((d_in, d2), lambda i: (0, 0)),       # W_[v|q] (bf16, resident)
            row_d2, row_d2, row_d2,                           # b / gamma / beta ([v|q])
        ],
        out_specs=(out_spec, out_spec),
        compiler_params=_compiler_params(("parallel",)),
        cost_estimate=cost,
    )(x, prep["key_w"], prep["key_b"], prep["key_g"], prep["key_bt"],
      prep["vq_w"], prep["vq_b"], prep["vq_g"], prep["vq_bt"])


# ----------------------------------------------------------------------------
# Kernel 2: N-tiled online-softmax attention + Conv1d head (kernel_size == D)
#   per tile:  S^T = q_max . Q_tile^T / sqrt(D)       (C, tile)  lane-dense
#              online update of m (max), l (denom), B-accumulator (C, D)
#   last tile: B = acc / l ; head C = sum_{c,d} B * W_head + bias
#   Outputs: raw scores S^T, final m, final l, B, C   (A is normalised in glue)
# ----------------------------------------------------------------------------
def _attn_head_kernel(n_total, tile, mask_tail, inv_sqrt_d,
                      qmax_ref, q_ref, v_ref, wh_ref, bh_ref,
                      st_ref, m_ref, l_ref, b_ref, c_ref):
    i = pl.program_id(0)

    @pl.when(i == 0)
    def _init():
        m_ref[...] = jnp.full_like(m_ref, -jnp.inf)
        l_ref[...] = jnp.zeros_like(l_ref)
        b_ref[...] = jnp.zeros_like(b_ref)

    q = q_ref[...]                                            # (tile, D) bf16
    v = v_ref[...]                                            # (tile, D) bf16
    s = jax.lax.dot_general(qmax_ref[...], q, (((1,), (1,)), ((), ())),
                            preferred_element_type=jnp.float32) * inv_sqrt_d
    if mask_tail:                                             # partial last tile
        col = jax.lax.broadcasted_iota(jnp.int32, s.shape, 1) + i * tile
        s = jnp.where(col < n_total, s, -jnp.inf)
        row = jax.lax.broadcasted_iota(jnp.int32, (tile, 1), 0) + i * tile
        v = jnp.where(row < n_total, v, jnp.zeros_like(v))
    st_ref[...] = s                                           # raw scores (lane-dense)

    m_prev = m_ref[...]
    m_new = jnp.maximum(m_prev, jnp.max(s, axis=-1, keepdims=True))
    alpha = jnp.exp(m_prev - m_new)
    p = jnp.exp(s - m_new)                                    # (C, tile) f32
    l_ref[...] = alpha * l_ref[...] + jnp.sum(p, axis=-1, keepdims=True)
    b_ref[...] = alpha * b_ref[...] + jnp.dot(p.astype(v.dtype), v,
                                              preferred_element_type=jnp.float32)
    m_ref[...] = m_new

    @pl.when(i == pl.num_programs(0) - 1)
    def _finalize():
        # approx reciprocal (EUP slot): attention rows sum to 1 +/- ~1e-3 rel.
        b_fin = b_ref[...] * pl.reciprocal(l_ref[...], approx=True)
        b_ref[...] = b_fin
        # Conv1d head (kernel_size == in_size): single broadcast-multiply +
        # reductions instead of a loop of M=1 MXU matmuls.
        prod = b_fin[:, :, None] * wh_ref[...]                # (C, D, O) f32, VPU
        c_ref[...] = jnp.sum(jnp.sum(prod, axis=0), axis=0, keepdims=True) + bh_ref[...]


def _attention_head(q_max, q, v, head_w_t, head_b, *, tile=None):
    n, d = q.shape
    classes, _, n_out = head_w_t.shape
    if tile is None:
        # bytes/row of streamed traffic: bf16 Q + bf16 V + f32 score column
        tile = _choose_tile_rows(n, bytes_per_row=2 * 2 * d + 4 * classes)
    grid_n = pl.cdiv(n, tile)
    mask_tail = (n % tile) != 0
    kernel = functools.partial(_attn_head_kernel, n, tile, mask_tail,
                               1.0 / math.sqrt(d))
    cost = pl.CostEstimate(
        flops=int(4 * classes * n * d + 2 * classes * d * n_out),
        transcendentals=int(classes * n),
        bytes_accessed=int(2 * 2 * n * d + 4 * classes * n + 4 * classes * d),
    )
    return pl.pallas_call(
        kernel,
        out_shape=(
            jax.ShapeDtypeStruct((classes, n), jnp.float32),   # raw scores S^T
            jax.ShapeDtypeStruct((classes, 1), jnp.float32),   # final running max
            jax.ShapeDtypeStruct((classes, 1), jnp.float32),   # final denom
            jax.ShapeDtypeStruct((classes, d), jnp.float32),   # B
            jax.ShapeDtypeStruct((1, n_out), jnp.float32),     # head output C
        ),
        grid=(grid_n,),
        in_specs=[
            pl.BlockSpec((classes, d), lambda i: (0, 0)),            # q_max (bf16)
            pl.BlockSpec((tile, d), lambda i: (i, 0)),               # Q tile (bf16)
            pl.BlockSpec((tile, d), lambda i: (i, 0)),               # V tile (bf16)
            pl.BlockSpec((classes, d, n_out), lambda i: (0, 0, 0)),  # head weight
            pl.BlockSpec((1, n_out), lambda i: (0, 0)),              # head bias
        ],
        out_specs=(
            pl.BlockSpec((classes, tile), lambda i: (0, i)),
            pl.BlockSpec((classes, 1), lambda i: (0, 0)),
            pl.BlockSpec((classes, 1), lambda i: (0, 0)),
            pl.BlockSpec((classes, d), lambda i: (0, 0)),
            pl.BlockSpec((1, n_out), lambda i: (0, 0)),
        ),
        compiler_params=_compiler_params(("arbitrary",)),
        cost_estimate=cost,
    )(q_max, q, v, head_w_t, head_b)


# ----------------------------------------------------------------------------
# Full AttDual forward (glue in plain JAX, hot paths in Pallas)
# ----------------------------------------------------------------------------
def att_dual_forward(features, c, prep, *, proj_tile=None, attn_tile=None):
    n, d = features.shape
    classes = prep["head_b"].shape[-1]

    V, Q = _fused_projection(features, prep, tile=proj_tile)   # bf16 (N, D) each

    # torch.sort(c, 0, descending=True)[1][0, :] == per-class argmax over instances.
    # q_max = query(K[m_idx]) == Q[m_idx] (the query branch is strictly row-wise).
    # TODO(synk): tie-breaking of torch.sort with equal scores is unspecified; argmax picks first.
    m_idx = jnp.argmax(c, axis=0)                              # (classes,)
    q_max = jnp.take(Q, m_idx, axis=0)                         # (classes, D) gather

    st, m, l, B, C_out = _attention_head(q_max, Q, V, prep["head_w"],
                                         prep["head_b"], tile=attn_tile)

    # Normalise the returned attention matrix from the kernel-produced raw
    # scores + final (max, denom).  O(classes * N) glue, exact division.
    A = (jnp.exp(st - m) / l).T                                # (N, classes)
    B3 = B.reshape(1, classes, d)                              # (1, classes, D)
    return C_out, A, B3


# ----------------------------------------------------------------------------
# One-time parameter packing (hoisted out of the jitted forward)
# ----------------------------------------------------------------------------
def prepare_params(params):
    bf = jnp.bfloat16
    d = params["key_w"].shape[0]
    d2 = 2 * d
    return dict(
        key_w=params["key_w"].astype(bf),
        key_b=params["key_b"].reshape(1, d).astype(jnp.float32),
        key_g=params["key_g"].reshape(1, d).astype(jnp.float32),
        key_bt=params["key_bt"].reshape(1, d).astype(jnp.float32),
        vq_w=jnp.concatenate([params["val_w"], params["qry_w"]], axis=1).astype(bf),
        vq_b=jnp.concatenate([params["val_b"], params["qry_b"]]).reshape(1, d2).astype(jnp.float32),
        vq_g=jnp.concatenate([params["val_g"], params["qry_g"]]).reshape(1, d2).astype(jnp.float32),
        vq_bt=jnp.concatenate([params["val_bt"], params["qry_bt"]]).reshape(1, d2).astype(jnp.float32),
        # Conv1d weight (C_out, C_in, D) -> (C_in, D, C_out); head stays f32.
        head_w=jnp.transpose(params["head_w"], (1, 2, 0)).astype(jnp.float32),
        head_b=params["head_b"].reshape(1, -1).astype(jnp.float32),
    )


# ----------------------------------------------------------------------------
# Pure-f32 JAX reference (numerical sanity check)
# ----------------------------------------------------------------------------
def _reference_forward(features, c, params):
    def proj(x, w, b, g, bt):
        y = x @ w + b
        mean = y.mean(-1, keepdims=True)
        var = ((y - mean) ** 2).mean(-1, keepdims=True)
        yh = (y - mean) / jnp.sqrt(var + _LN_EPS) * g + bt
        return 0.5 * yh * (1.0 + jax.lax.erf(yh * _INV_SQRT2))

    K = proj(features, params["key_w"], params["key_b"], params["key_g"], params["key_bt"])
    V = proj(K, params["val_w"], params["val_b"], params["val_g"], params["val_bt"])
    Q = proj(K, params["qry_w"], params["qry_b"], params["qry_g"], params["qry_bt"])
    m_idx = jnp.argmax(c, axis=0)
    q_max = proj(K[m_idx], params["qry_w"], params["qry_b"], params["qry_g"], params["qry_bt"])
    A = jax.nn.softmax(Q @ q_max.T / jnp.sqrt(jnp.float32(Q.shape[1])), axis=0)
    B = A.T @ V
    C_out = jnp.einsum("id,oid->o", B, params["head_w"]) + params["head_b"]
    return C_out.reshape(1, -1), A, B.reshape(1, *B.shape)


# ----------------------------------------------------------------------------
# Deterministic parameter construction (PyTorch-default-like init)
# ----------------------------------------------------------------------------
def make_params(key, in_size, classes):
    ks = jax.random.split(key, 5)
    scale = 1.0 / math.sqrt(in_size)

    def lin(k):
        kw, kb = jax.random.split(k)
        w = jax.random.uniform(kw, (in_size, in_size), jnp.float32, -scale, scale)
        b = jax.random.uniform(kb, (in_size,), jnp.float32, -scale, scale)
        return w, b

    key_w, key_b = lin(ks[0])
    val_w, val_b = lin(ks[1])
    qry_w, qry_b = lin(ks[2])
    ones = jnp.ones((in_size,), jnp.float32)
    zeros = jnp.zeros((in_size,), jnp.float32)
    cscale = 1.0 / math.sqrt(classes * in_size)
    head_w = jax.random.uniform(ks[3], (classes, classes, in_size), jnp.float32, -cscale, cscale)
    head_b = jax.random.uniform(ks[4], (classes,), jnp.float32, -cscale, cscale)
    return dict(
        key_w=key_w, key_b=key_b, key_g=ones, key_bt=zeros,
        val_w=val_w, val_b=val_b, val_g=ones, val_bt=zeros,
        qry_w=qry_w, qry_b=qry_b, qry_g=ones, qry_bt=zeros,
        head_w=head_w, head_b=head_b,
    )


if __name__ == "__main__":
    def run_case(n, d, classes, key, **tiles):
        k_feat, k_c, k_par = jax.random.split(key, 3)
        features = jax.random.normal(k_feat, (n, d), jnp.float32)
        c = jax.random.normal(k_c, (n, classes), jnp.float32)   # instance scores
        params = make_params(k_par, d, classes)
        prep = prepare_params(params)

        fwd = jax.jit(att_dual_forward, static_argnames=("proj_tile", "attn_tile"))
        C_out, A, B = fwd(features, c, prep, **tiles)
        jax.block_until_ready((C_out, A, B))

        assert C_out.shape == (1, classes)
        assert A.shape == (n, classes)
        assert B.shape == (1, classes, d)
        # softmax over instances: every column of A sums to 1
        assert jnp.allclose(jnp.sum(A, axis=0), 1.0, atol=1e-3)

        # Looser tolerance than a pure-f32 kernel: MXU operands are bf16
        # (f32 accumulation), per the performance review.
        C_ref, A_ref, B_ref = _reference_forward(features, c, params)
        assert jnp.allclose(C_out, C_ref, rtol=5e-2, atol=5e-2)
        assert jnp.allclose(A, A_ref, rtol=5e-2, atol=5e-2)
        assert jnp.allclose(B, B_ref, rtol=5e-2, atol=5e-2)

    root = jax.random.PRNGKey(0)
    k1, k2 = jax.random.split(root)
    # Small shape (single-tile path): N=8 instances, in_size=32, classes=4.
    run_case(8, 32, 4, k1)
    # Larger shape with forced small tiles: exercises the N-tiled projection
    # grid, the online-softmax attention grid and partial-tile masking.
    run_case(333, 128, 6, k2, proj_tile=128, attn_tile=128)

    print("KERNEL_OK")
</pallas_src>

<mosaic_0001>
module attributes {stable_mosaic.version = 11 : i64} {
  func.func @_proj_fused_kernel(%arg0: i32, %arg1: memref<8x32xf32, #tpu.memory_space<vmem>>, %arg2: memref<32x32xbf16, #tpu.memory_space<vmem>>, %arg3: memref<1x32xf32, #tpu.memory_space<vmem>>, %arg4: memref<1x32xf32, #tpu.memory_space<vmem>>, %arg5: memref<1x32xf32, #tpu.memory_space<vmem>>, %arg6: memref<32x64xbf16, #tpu.memory_space<vmem>>, %arg7: memref<1x64xf32, #tpu.memory_space<vmem>>, %arg8: memref<1x64xf32, #tpu.memory_space<vmem>>, %arg9: memref<1x64xf32, #tpu.memory_space<vmem>>, %arg10: memref<8x32xbf16, #tpu.memory_space<vmem>>, %arg11: memref<8x32xbf16, #tpu.memory_space<vmem>>) attributes {dimension_semantics = [#tpu.dimension_semantics<parallel>], iteration_bounds = array<i64: 1>, scalar_prefetch = 0 : i64, scratch_operands = 0 : i64, tpu.core_type = #tpu.core_type<tc>, window_params = [{transform_indices = @transform_0, window_bounds = array<i64: 8, 32>}, {pipeline_mode = #tpu.pipeline_mode<synchronous>, transform_indices = @transform_1, window_bounds = array<i64: 32, 32>}, {pipeline_mode = #tpu.pipeline_mode<synchronous>, transform_indices = @transform_2, window_bounds = array<i64: 1, 32>}, {pipeline_mode = #tpu.pipeline_mode<synchronous>, transform_indices = @transform_3, window_bounds = array<i64: 1, 32>}, {pipeline_mode = #tpu.pipeline_mode<synchronous>, transform_indices = @transform_4, window_bounds = array<i64: 1, 32>}, {pipeline_mode = #tpu.pipeline_mode<synchronous>, transform_indices = @transform_5, window_bounds = array<i64: 32, 64>}, {pipeline_mode = #tpu.pipeline_mode<synchronous>, transform_indices = @transform_6, window_bounds = array<i64: 1, 64>}, {pipeline_mode = #tpu.pipeline_mode<synchronous>, transform_indices = @transform_7, window_bounds = array<i64: 1, 64>}, {pipeline_mode = #tpu.pipeline_mode<synchronous>, transform_indices = @transform_8, window_bounds = array<i64: 1, 64>}, {transform_indices = @transform_9, window_bounds = array<i64: 8, 32>}, {transform_indices = @transform_10, window_bounds = array<i64: 8, 32>}]} {
    %c0 = arith.constant 0 : index
    %c0_0 = arith.constant 0 : index
    %0 = vector.load %arg1[%c0, %c0_0] : memref<8x32xf32, #tpu.memory_space<vmem>>, vector<8x32xf32>
    %1 = arith.truncf %0 : vector<8x32xf32> to vector<8x32xbf16>
    %c0_1 = arith.constant 0 : index
    %c0_2 = arith.constant 0 : index
    %2 = vector.load %arg2[%c0_1, %c0_2] : memref<32x32xbf16, #tpu.memory_space<vmem>>, vector<32x32xbf16>
    %cst = arith.constant dense<0.000000e+00> : vector<8x32xf32>
    %3 = tpu.matmul %1, %2, %cst {dimension_numbers = #tpu.dot_dimension_numbers<[1], [0], [0], [1], [0, 0, 1, 1], [], []>} : vector<8x32xbf16>, vector<32x32xbf16>, vector<8x32xf32> -> vector<8x32xf32>
    %c0_3 = arith.constant 0 : index
    %c0_4 = arith.constant 0 : index
    %4 = vector.load %arg3[%c0_3, %c0_4] : memref<1x32xf32, #tpu.memory_space<vmem>>, vector<1x32xf32>
    %5 = vector.broadcast %4 : vector<1x32xf32> to vector<8x32xf32>
    %6 = arith.addf %3, %5 : vector<8x32xf32>
    %c0_5 = arith.constant 0 : index
    %c0_6 = arith.constant 0 : index
    %7 = vector.load %arg4[%c0_5, %c0_6] : memref<1x32xf32, #tpu.memory_space<vmem>>, vector<1x32xf32>
    %c0_7 = arith.constant 0 : index
    %c0_8 = arith.constant 0 : index
    %8 = vector.load %arg5[%c0_7, %c0_8] : memref<1x32xf32, #tpu.memory_space<vmem>>, vector<1x32xf32>
    %cst_9 = arith.constant dense<0.000000e+00> : vector<8xf32>
    %9 = vector.multi_reduction <add>, %6, %cst_9 [1] : vector<8x32xf32> to vector<8xf32>
    %10 = vector.shape_cast %9 : vector<8xf32> to vector<8x1xf32>
    %cst_10 = arith.constant 3.200000e+01 : f32
    %11 = vector.broadcast %cst_10 : f32 to vector<8x1xf32>
    %12 = arith.divf %10, %11 : vector<8x1xf32>
    %13 = vector.broadcast %12 : vector<8x1xf32> to vector<8x32xf32>
    %14 = arith.subf %6, %13 : vector<8x32xf32>
    %15 = arith.mulf %14, %14 : vector<8x32xf32>
    %cst_11 = arith.constant dense<0.000000e+00> : vector<8xf32>
    %16 = vector.multi_reduction <add>, %15, %cst_11 [1] : vector<8x32xf32> to vector<8xf32>
    %17 = vector.shape_cast %16 : vector<8xf32> to vector<8x1xf32>
    %cst_12 = arith.constant 3.200000e+01 : f32
    %18 = vector.broadcast %cst_12 : f32 to vector<8x1xf32>
    %19 = arith.divf %17, %18 : vector<8x1xf32>
    %20 = vector.broadcast %12 : vector<8x1xf32> to vector<8x32xf32>
    %21 = arith.subf %6, %20 : vector<8x32xf32>
    %cst_13 = arith.constant 9.99999974E-6 : f32
    %22 = vector.broadcast %cst_13 : f32 to vector<8x1xf32>
    %23 = arith.addf %19, %22 : vector<8x1xf32>
    %24 = math.rsqrt %23 : vector<8x1xf32>
    %25 = vector.broadcast %24 : vector<8x1xf32> to vector<8x32xf32>
    %26 = arith.mulf %21, %25 : vector<8x32xf32>
    %27 = vector.broadcast %7 : vector<1x32xf32> to vector<8x32xf32>
    %28 = arith.mulf %26, %27 : vector<8x32xf32>
    %29 = vector.broadcast %8 : vector<1x32xf32> to vector<8x32xf32>
    %30 = arith.addf %28, %29 : vector<8x32xf32>
    %cst_14 = arith.constant 5.000000e-01 : f32
    %31 = vector.broadcast %cst_14 : f32 to vector<8x32xf32>
    %32 = arith.mulf %31, %30 : vector<8x32xf32>
    %cst_15 = arith.constant 0.707106769 : f32
    %33 = vector.broadcast %cst_15 : f32 to vector<8x32xf32>
    %34 = arith.mulf %30, %33 : vector<8x32xf32>
    %35 = math.erf %34 : vector<8x32xf32>
    %cst_16 = arith.constant 1.000000e+00 : f32
    %36 = vector.broadcast %cst_16 : f32 to vector<8x32xf32>
    %37 = arith.addf %36, %35 : vector<8x32xf32>
    %38 = arith.mulf %32, %37 : vector<8x32xf32>
    %39 = arith.truncf %38 : vector<8x32xf32> to vector<8x32xbf16>
    %c0_17 = arith.constant 0 : index
    %c0_18 = arith.constant 0 : index
    %40 = vector.load %arg6[%c0_17, %c0_18] : memref<32x64xbf16, #tpu.memory_space<vmem>>, vector<32x64xbf16>
    %cst_19 = arith.constant dense<0.000000e+00> : vector<8x64xf32>
    %41 = tpu.matmul %39, %40, %cst_19 {dimension_numbers = #tpu.dot_dimension_numbers<[1], [0], [0], [1], [0, 0, 1, 1], [], []>} : vector<8x32xbf16>, vector<32x64xbf16>, vector<8x64xf32> -> vector<8x64xf32>
    %c0_20 = arith.constant 0 : index
    %c0_21 = arith.constant 0 : index
    %42 = vector.load %arg7[%c0_20, %c0_21] : memref<1x64xf32, #tpu.memory_space<vmem>>, vector<1x64xf32>
    %43 = vector.broadcast %42 : vector<1x64xf32> to vector<8x64xf32>
    %44 = arith.addf %41, %43 : vector<8x64xf32>
    %45 = vector.extract_strided_slice %44 {offsets = [0, 0], sizes = [8, 32], strides = [1, 1]} : vector<8x64xf32> to vector<8x32xf32>
    %c0_22 = arith.constant 0 : index
    %c0_23 = arith.constant 0 : index
    %46 = vector.load %arg8[%c0_22, %c0_23] : memref<1x64xf32, #tpu.memory_space<vmem>>, vector<1x32xf32>
    %c0_24 = arith.constant 0 : index
    %c0_25 = arith.constant 0 : index
    %47 = vector.load %arg9[%c0_24, %c0_25] : memref<1x64xf32, #tpu.memory_space<vmem>>, vector<1x32xf32>
    %cst_26 = arith.constant dense<0.000000e+00> : vector<8xf32>
    %48 = vector.multi_reduction <add>, %45, %cst_26 [1] : vector<8x32xf32> to vector<8xf32>
    %49 = vector.shape_cast %48 : vector<8xf32> to vector<8x1xf32>
    %cst_27 = arith.constant 3.200000e+01 : f32
    %50 = vector.broadcast %cst_27 : f32 to vector<8x1xf32>
    %51 = arith.divf %49, %50 : vector<8x1xf32>
    %52 = vector.broadcast %51 : vector<8x1xf32> to vector<8x32xf32>
    %53 = arith.subf %45, %52 : vector<8x32xf32>
    %54 = arith.mulf %53, %53 : vector<8x32xf32>
    %cst_28 = arith.constant dense<0.000000e+00> : vector<8xf32>
    %55 = vector.multi_reduction <add>, %54, %cst_28 [1] : vector<8x32xf32> to vector<8xf32>
    %56 = vector.shape_cast %55 : vector<8xf32> to vector<8x1xf32>
    %cst_29 = arith.constant 3.200000e+01 : f32
    %57 = vector.broadcast %cst_29 : f32 to vector<8x1xf32>
    %58 = arith.divf %56, %57 : vector<8x1xf32>
    %59 = vector.broadcast %51 : vector<8x1xf32> to vector<8x32xf32>
    %60 = arith.subf %45, %59 : vector<8x32xf32>
    %cst_30 = arith.constant 9.99999974E-6 : f32
    %61 = vector.broadcast %cst_30 : f32 to vector<8x1xf32>
    %62 = arith.addf %58, %61 : vector<8x1xf32>
    %63 = math.rsqrt %62 : vector<8x1xf32>
    %64 = vector.broadcast %63 : vector<8x1xf32> to vector<8x32xf32>
    %65 = arith.mulf %60, %64 : vector<8x32xf32>
    %66 = vector.broadcast %46 : vector<1x32xf32> to vector<8x32xf32>
    %67 = arith.mulf %65, %66 : vector<8x32xf32>
    %68 = vector.broadcast %47 : vector<1x32xf32> to vector<8x32xf32>
    %69 = arith.addf %67, %68 : vector<8x32xf32>
    %cst_31 = arith.constant 5.000000e-01 : f32
    %70 = vector.broadcast %cst_31 : f32 to vector<8x32xf32>
    %71 = arith.mulf %70, %69 : vector<8x32xf32>
    %cst_32 = arith.constant 0.707106769 : f32
    %72 = vector.broadcast %cst_32 : f32 to vector<8x32xf32>
    %73 = arith.mulf %69, %72 : vector<8x32xf32>
    %74 = math.erf %73 : vector<8x32xf32>
    %cst_33 = arith.constant 1.000000e+00 : f32
    %75 = vector.broadcast %cst_33 : f32 to vector<8x32xf32>
    %76 = arith.addf %75, %74 : vector<8x32xf32>
    %77 = arith.mulf %71, %76 : vector<8x32xf32>
    %78 = arith.truncf %77 : vector<8x32xf32> to vector<8x32xbf16>
    %c0_34 = arith.constant 0 : index
    %c0_35 = arith.constant 0 : index
    %79 = vector.load %arg10[%c0_34, %c0_35] : memref<8x32xbf16, #tpu.memory_space<vmem>>, vector<8x32xbf16>
    tpu.vector_store %arg10[%c0_34, %c0_35], %78 {strides = array<i32>} : memref<8x32xbf16, #tpu.memory_space<vmem>>, vector<8x32xbf16>,
    %80 = vector.extract_strided_slice %44 {offsets = [0, 32], sizes = [8, 32], strides = [1, 1]} : vector<8x64xf32> to vector<8x32xf32>
    %c0_36 = arith.constant 0 : index
    %c32 = arith.constant 32 : index
    %81 = vector.load %arg8[%c0_36, %c32] : memref<1x64xf32, #tpu.memory_space<vmem>>, vector<1x32xf32>
    %c0_37 = arith.constant 0 : index
    %c32_38 = arith.constant 32 : index
    %82 = vector.load %arg9[%c0_37, %c32_38] : memref<1x64xf32, #tpu.memory_space<vmem>>, vector<1x32xf32>
    %cst_39 = arith.constant dense<0.000000e+00> : vector<8xf32>
    %83 = vector.multi_reduction <add>, %80, %cst_39 [1] : vector<8x32xf32> to vector<8xf32>
    %84 = vector.shape_cast %83 : vector<8xf32> to vector<8x1xf32>
    %cst_40 = arith.constant 3.200000e+01 : f32
    %85 = vector.broadcast %cst_40 : f32 to vector<8x1xf32>
    %86 = arith.divf %84, %85 : vector<8x1xf32>
    %87 = vector.broadcast %86 : vector<8x1xf32> to vector<8x32xf32>
    %88 = arith.subf %80, %87 : vector<8x32xf32>
    %89 = arith.mulf %88, %88 : vector<8x32xf32>
    %cst_41 = arith.constant dense<0.000000e+00> : vector<8xf32>
    %90 = vector.multi_reduction <add>, %89, %cst_41 [1] : vector<8x32xf32> to vector<8xf32>
    %91 = vector.shape_cast %90 : vector<8xf32> to vector<8x1xf32>
    %cst_42 = arith.constant 3.200000e+01 : f32
    %92 = vector.broadcast %cst_42 : f32 to vector<8x1xf32>
    %93 = arith.divf %91, %92 : vector<8x1xf32>
    %94 = vector.broadcast %86 : vector<8x1xf32> to vector<8x32xf32>
    %95 = arith.subf %80, %94 : vector<8x32xf32>
    %cst_43 = arith.constant 9.99999974E-6 : f32
    %96 = vector.broadcast %cst_43 : f32 to vector<8x1xf32>
    %97 = arith.addf %93, %96 : vector<8x1xf32>
    %98 = math.rsqrt %97 : vector<8x1xf32>
    %99 = vector.broadcast %98 : vector<8x1xf32> to vector<8x32xf32>
    %100 = arith.mulf %95, %99 : vector<8x32xf32>
    %101 = vector.broadcast %81 : vector<1x32xf32> to vector<8x32xf32>
    %102 = arith.mulf %100, %101 : vector<8x32xf32>
    %103 = vector.broadcast %82 : vector<1x32xf32> to vector<8x32xf32>
    %104 = arith.addf %102, %103 : vector<8x32xf32>
    %cst_44 = arith.constant 5.000000e-01 : f32
    %105 = vector.broadcast %cst_44 : f32 to vector<8x32xf32>
    %106 = arith.mulf %105, %104 : vector<8x32xf32>
    %cst_45 = arith.constant 0.707106769 : f32
    %107 = vector.broadcast %cst_45 : f32 to vector<8x32xf32>
    %108 = arith.mulf %104, %107 : vector<8x32xf32>
    %109 = math.erf %108 : vector<8x32xf32>
    %cst_46 = arith.constant 1.000000e+00 : f32
    %110 = vector.broadcast %cst_46 : f32 to vector<8x32xf32>
    %111 = arith.addf %110, %109 : vector<8x32xf32>
    %112 = arith.mulf %106, %111 : vector<8x32xf32>
    %113 = arith.truncf %112 : vector<8x32xf32> to vector<8x32xbf16>
    %c0_47 = arith.constant 0 : index
    %c0_48 = arith.constant 0 : index
    %114 = vector.load %arg11[%c0_47, %c0_48] : memref<8x32xbf16, #tpu.memory_space<vmem>>, vector<8x32xbf16>
    tpu.vector_store %arg11[%c0_47, %c0_48], %113 {strides = array<i32>} : memref<8x32xbf16, #tpu.memory_space<vmem>>, vector<8x32xbf16>,
    return
  }
  func.func @transform_0(%arg0: i32) -> (i32, i32) {
    %c0_i32 = arith.constant 0 : i32
    %c0_i32_0 = arith.constant 0 : i32
    return %arg0, %c0_i32 : i32, i32
  }
  func.func @transform_1(%arg0: i32) -> (i32, i32) {
    %c0_i32 = arith.constant 0 : i32
    %c0_i32_0 = arith.constant 0 : i32
    %c0_i32_1 = arith.constant 0 : i32
    return %c0_i32, %c0_i32_0 : i32, i32
  }
  func.func @transform_2(%arg0: i32) -> (i32, i32) {
    %c0_i32 = arith.constant 0 : i32
    %c0_i32_0 = arith.constant 0 : i32
    %c0_i32_1 = arith.constant 0 : i32
    return %c0_i32, %c0_i32_0 : i32, i32
  }
  func.func @transform_3(%arg0: i32) -> (i32, i32) {
    %c0_i32 = arith.constant 0 : i32
    %c0_i32_0 = arith.constant 0 : i32
    %c0_i32_1 = arith.constant 0 : i32
    return %c0_i32, %c0_i32_0 : i32, i32
  }
  func.func @transform_4(%arg0: i32) -> (i32, i32) {
    %c0_i32 = arith.constant 0 : i32
    %c0_i32_0 = arith.constant 0 : i32
    %c0_i32_1 = arith.constant 0 : i32
    return %c0_i32, %c0_i32_0 : i32, i32
  }
  func.func @transform_5(%arg0: i32) -> (i32, i32) {
    %c0_i32 = arith.constant 0 : i32
    %c0_i32_0 = arith.constant 0 : i32
    %c0_i32_1 = arith.constant 0 : i32
    return %c0_i32, %c0_i32_0 : i32, i32
  }
  func.func @transform_6(%arg0: i32) -> (i32, i32) {
    %c0_i32 = arith.constant 0 : i32
    %c0_i32_0 = arith.constant 0 : i32
    %c0_i32_1 = arith.constant 0 : i32
    return %c0_i32, %c0_i32_0 : i32, i32
  }
  func.func @transform_7(%arg0: i32) -> (i32, i32) {
    %c0_i32 = arith.constant 0 : i32
    %c0_i32_0 = arith.constant 0 : i32
    %c0_i32_1 = arith.constant 0 : i32
    return %c0_i32, %c0_i32_0 : i32, i32
  }
  func.func @transform_8(%arg0: i32) -> (i32, i32) {
    %c0_i32 = arith.constant 0 : i32
    %c0_i32_0 = arith.constant 0 : i32
    %c0_i32_1 = arith.constant 0 : i32
    return %c0_i32, %c0_i32_0 : i32, i32
  }
  func.func @transform_9(%arg0: i32) -> (i32, i32) {
    %c0_i32 = arith.constant 0 : i32
    %c0_i32_0 = arith.constant 0 : i32
    return %arg0, %c0_i32 : i32, i32
  }
  func.func @transform_10(%arg0: i32) -> (i32, i32) {
    %c0_i32 = arith.constant 0 : i32
    %c0_i32_0 = arith.constant 0 : i32
    return %arg0, %c0_i32 : i32, i32
  }
}

module attributes {stable_mosaic.version = 11 : i64} {
  func.func @_attn_head_kernel(%arg0: i32, %arg1: memref<4x32xbf16, #tpu.memory_space<vmem>>, %arg2: memref<8x32xbf16, #tpu.memory_space<vmem>>, %arg3: memref<8x32xbf16, #tpu.memory_space<vmem>>, %arg4: memref<4x32x4xf32, #tpu.memory_space<vmem>>, %arg5: memref<1x4xf32, #tpu.memory_space<vmem>>, %arg6: memref<4x8xf32, #tpu.memory_space<vmem>>, %arg7: memref<4x1xf32, #tpu.memory_space<vmem>>, %arg8: memref<4x1xf32, #tpu.memory_space<vmem>>, %arg9: memref<4x32xf32, #tpu.memory_space<vmem>>, %arg10: memref<1x4xf32, #tpu.memory_space<vmem>>) attributes {dimension_semantics = [#tpu.dimension_semantics<arbitrary>], iteration_bounds = array<i64: 1>, scalar_prefetch = 0 : i64, scratch_operands = 0 : i64, tpu.core_type = #tpu.core_type<tc>, window_params = [{pipeline_mode = #tpu.pipeline_mode<synchronous>, transform_indices = @transform_0, window_bounds = array<i64: 4, 32>}, {transform_indices = @transform_1, window_bounds = array<i64: 8, 32>}, {transform_indices = @transform_2, window_bounds = array<i64: 8, 32>}, {pipeline_mode = #tpu.pipeline_mode<synchronous>, transform_indices = @transform_3, window_bounds = array<i64: 4, 32, 4>}, {pipeline_mode = #tpu.pipeline_mode<synchronous>, transform_indices = @transform_4, window_bounds = array<i64: 1, 4>}, {transform_indices = @transform_5, window_bounds = array<i64: 4, 8>}, {pipeline_mode = #tpu.pipeline_mode<synchronous>, transform_indices = @transform_6, window_bounds = array<i64: 4, 1>}, {pipeline_mode = #tpu.pipeline_mode<synchronous>, transform_indices = @transform_7, window_bounds = array<i64: 4, 1>}, {pipeline_mode = #tpu.pipeline_mode<synchronous>, transform_indices = @transform_8, window_bounds = array<i64: 4, 32>}, {pipeline_mode = #tpu.pipeline_mode<synchronous>, transform_indices = @transform_9, window_bounds = array<i64: 1, 4>}]} {
    %c0_i32 = arith.constant 0 : i32
    %0 = arith.cmpi eq, %arg0, %c0_i32 : i32
    %1 = arith.extui %0 : i1 to i32
    %c0_i32_0 = arith.constant 0 : i32
    %2 = arith.cmpi ne, %1, %c0_i32_0 : i32
    scf.if %2 {
      %cst_26 = arith.constant 0xFF800000 : f32
      %36 = vector.broadcast %cst_26 : f32 to vector<4x1xf32>
      %c0_27 = arith.constant 0 : index
      %c0_28 = arith.constant 0 : index
      %37 = vector.load %arg7[%c0_27, %c0_28] : memref<4x1xf32, #tpu.memory_space<vmem>>, vector<4x1xf32>
      tpu.vector_store %arg7[%c0_27, %c0_28], %36 {strides = array<i32>} : memref<4x1xf32, #tpu.memory_space<vmem>>, vector<4x1xf32>,
      %cst_29 = arith.constant 0.000000e+00 : f32
      %38 = vector.broadcast %cst_29 : f32 to vector<4x1xf32>
      %c0_30 = arith.constant 0 : index
      %c0_31 = arith.constant 0 : index
      %39 = vector.load %arg8[%c0_30, %c0_31] : memref<4x1xf32, #tpu.memory_space<vmem>>, vector<4x1xf32>
      tpu.vector_store %arg8[%c0_30, %c0_31], %38 {strides = array<i32>} : memref<4x1xf32, #tpu.memory_space<vmem>>, vector<4x1xf32>,
      %cst_32 = arith.constant 0.000000e+00 : f32
      %40 = vector.broadcast %cst_32 : f32 to vector<4x32xf32>
      %c0_33 = arith.constant 0 : index
      %c0_34 = arith.constant 0 : index
      %41 = vector.load %arg9[%c0_33, %c0_34] : memref<4x32xf32, #tpu.memory_space<vmem>>, vector<4x32xf32>
      tpu.vector_store %arg9[%c0_33, %c0_34], %40 {strides = array<i32>} : memref<4x32xf32, #tpu.memory_space<vmem>>, vector<4x32xf32>,
    } else {
    }
    %c0 = arith.constant 0 : index
    %c0_1 = arith.constant 0 : index
    %3 = vector.load %arg2[%c0, %c0_1] : memref<8x32xbf16, #tpu.memory_space<vmem>>, vector<8x32xbf16>
    %c0_2 = arith.constant 0 : index
    %c0_3 = arith.constant 0 : index
    %4 = vector.load %arg3[%c0_2, %c0_3] : memref<8x32xbf16, #tpu.memory_space<vmem>>, vector<8x32xbf16>
    %c0_4 = arith.constant 0 : index
    %c0_5 = arith.constant 0 : index
    %5 = vector.load %arg1[%c0_4, %c0_5] : memref<4x32xbf16, #tpu.memory_space<vmem>>, vector<4x32xbf16>
    %cst = arith.constant dense<0.000000e+00> : vector<4x8xf32>
    %6 = tpu.matmul %5, %3, %cst {dimension_numbers = #tpu.dot_dimension_numbers<[1], [1], [0], [0], [0, 0, 1, 0], [], []>} : vector<4x32xbf16>, vector<8x32xbf16>, vector<4x8xf32> -> vector<4x8xf32>
    %cst_6 = arith.constant 0.176776692 : f32
    %7 = vector.broadcast %cst_6 : f32 to vector<4x8xf32>
    %8 = arith.mulf %6, %7 : vector<4x8xf32>
    %c0_7 = arith.constant 0 : index
    %c0_8 = arith.constant 0 : index
    %9 = vector.load %arg6[%c0_7, %c0_8] : memref<4x8xf32, #tpu.memory_space<vmem>>, vector<4x8xf32>
    tpu.vector_store %arg6[%c0_7, %c0_8], %8 {strides = array<i32>} : memref<4x8xf32, #tpu.memory_space<vmem>>, vector<4x8xf32>,
    %c0_9 = arith.constant 0 : index
    %c0_10 = arith.constant 0 : index
    %10 = vector.load %arg7[%c0_9, %c0_10] : memref<4x1xf32, #tpu.memory_space<vmem>>, vector<4x1xf32>
    %cst_11 = arith.constant dense<0xFF800000> : vector<4xf32>
    %11 = vector.multi_reduction <maximumf>, %8, %cst_11 [1] : vector<4x8xf32> to vector<4xf32>
    %12 = vector.shape_cast %11 : vector<4xf32> to vector<4x1xf32>
    %13 = arith.maximumf %10, %12 : vector<4x1xf32>
    %14 = arith.subf %10, %13 : vector<4x1xf32>
    %15 = math.exp %14 : vector<4x1xf32>
    %16 = vector.broadcast %13 : vector<4x1xf32> to vector<4x8xf32>
    %17 = arith.subf %8, %16 : vector<4x8xf32>
    %18 = math.exp %17 : vector<4x8xf32>
    %c0_12 = arith.constant 0 : index
    %c0_13 = arith.constant 0 : index
    %19 = vector.load %arg8[%c0_12, %c0_13] : memref<4x1xf32, #tpu.memory_space<vmem>>, vector<4x1xf32>
    %20 = arith.mulf %15, %19 : vector<4x1xf32>
    %cst_14 = arith.constant dense<0.000000e+00> : vector<4xf32>
    %21 = vector.multi_reduction <add>, %18, %cst_14 [1] : vector<4x8xf32> to vector<4xf32>
    %22 = vector.shape_cast %21 : vector<4xf32> to vector<4x1xf32>
    %23 = arith.addf %20, %22 : vector<4x1xf32>
    %c0_15 = arith.constant 0 : index
    %c0_16 = arith.constant 0 : index
    %24 = vector.load %arg8[%c0_15, %c0_16] : memref<4x1xf32, #tpu.memory_space<vmem>>, vector<4x1xf32>
    tpu.vector_store %arg8[%c0_15, %c0_16], %23 {strides = array<i32>} : memref<4x1xf32, #tpu.memory_space<vmem>>, vector<4x1xf32>,
    %c0_17 = arith.constant 0 : index
    %c0_18 = arith.constant 0 : index
    %25 = vector.load %arg9[%c0_17, %c0_18] : memref<4x32xf32, #tpu.memory_space<vmem>>, vector<4x32xf32>
    %26 = vector.broadcast %15 : vector<4x1xf32> to vector<4x32xf32>
    %27 = arith.mulf %26, %25 : vector<4x32xf32>
    %28 = arith.truncf %18 : vector<4x8xf32> to vector<4x8xbf16>
    %cst_19 = arith.constant dense<0.000000e+00> : vector<4x32xf32>
    %29 = tpu.matmul %28, %4, %cst_19 {dimension_numbers = #tpu.dot_dimension_numbers<[1], [0], [0], [1], [0, 0, 1, 1], [], []>} : vector<4x8xbf16>, vector<8x32xbf16>, vector<4x32xf32> -> vector<4x32xf32>
    %30 = arith.addf %27, %29 : vector<4x32xf32>
    %c0_20 = arith.constant 0 : index
    %c0_21 = arith.constant 0 : index
    %31 = vector.load %arg9[%c0_20, %c0_21] : memref<4x32xf32, #tpu.memory_space<vmem>>, vector<4x32xf32>
    tpu.vector_store %arg9[%c0_20, %c0_21], %30 {strides = array<i32>} : memref<4x32xf32, #tpu.memory_space<vmem>>, vector<4x32xf32>,
    %c0_22 = arith.constant 0 : index
    %c0_23 = arith.constant 0 : index
    %32 = vector.load %arg7[%c0_22, %c0_23] : memref<4x1xf32, #tpu.memory_space<vmem>>, vector<4x1xf32>
    tpu.vector_store %arg7[%c0_22, %c0_23], %13 {strides = array<i32>} : memref<4x1xf32, #tpu.memory_space<vmem>>, vector<4x1xf32>,
    %c0_i32_24 = arith.constant 0 : i32
    %33 = arith.cmpi eq, %arg0, %c0_i32_24 : i32
    %34 = arith.extui %33 : i1 to i32
    %c0_i32_25 = arith.constant 0 : i32
    %35 = arith.cmpi ne, %34, %c0_i32_25 : i32
    scf.if %35 {
      %c0_26 = arith.constant 0 : index
      %c0_27 = arith.constant 0 : index
      %36 = vector.load %arg9[%c0_26, %c0_27] : memref<4x32xf32, #tpu.memory_space<vmem>>, vector<4x32xf32>
      %c0_28 = arith.constant 0 : index
      %c0_29 = arith.constant 0 : index
      %37 = vector.load %arg8[%c0_28, %c0_29] : memref<4x1xf32, #tpu.memory_space<vmem>>, vector<4x1xf32>
      %38 = tpu.reciprocal %37 {approx = true} : vector<4x1xf32> -> vector<4x1xf32>
      %39 = vector.broadcast %38 : vector<4x1xf32> to vector<4x32xf32>
      %40 = arith.mulf %36, %39 : vector<4x32xf32>
      %c0_30 = arith.constant 0 : index
      %c0_31 = arith.constant 0 : index
      %41 = vector.load %arg9[%c0_30, %c0_31] : memref<4x32xf32, #tpu.memory_space<vmem>>, vector<4x32xf32>
      tpu.vector_store %arg9[%c0_30, %c0_31], %40 {strides = array<i32>} : memref<4x32xf32, #tpu.memory_space<vmem>>, vector<4x32xf32>,
      %42 = vector.shape_cast %40 : vector<4x32xf32> to vector<4x32x1xf32>
      %c0_32 = arith.constant 0 : index
      %c0_33 = arith.constant 0 : index
      %c0_34 = arith.constant 0 : index
      %43 = vector.load %arg4[%c0_32, %c0_33, %c0_34] : memref<4x32x4xf32, #tpu.memory_space<vmem>>, vector<4x32x4xf32>
      %44 = vector.broadcast %42 : vector<4x32x1xf32> to vector<4x32x4xf32>
      %45 = arith.mulf %44, %43 : vector<4x32x4xf32>
      %cst_35 = arith.constant dense<0.000000e+00> : vector<32x4xf32>
      %46 = vector.multi_reduction <add>, %45, %cst_35 [0] : vector<4x32x4xf32> to vector<32x4xf32>
      %cst_36 = arith.constant dense<0.000000e+00> : vector<4xf32>
      %47 = vector.multi_reduction <add>, %46, %cst_36 [0] : vector<32x4xf32> to vector<4xf32>
      %48 = vector.shape_cast %47 : vector<4xf32> to vector<1x4xf32>
      %c0_37 = arith.constant 0 : index
      %c0_38 = arith.constant 0 : index
      %49 = vector.load %arg5[%c0_37, %c0_38] : memref<1x4xf32, #tpu.memory_space<vmem>>, vector<1x4xf32>
      %50 = arith.addf %48, %49 : vector<1x4xf32>
      %c0_39 = arith.constant 0 : index
      %c0_40 = arith.constant 0 : index
      %51 = vector.load %arg10[%c0_39, %c0_40] : memref<1x4xf32, #tpu.memory_space<vmem>>, vector<1x4xf32>
      tpu.vector_store %arg10[%c0_39, %c0_40], %50 {strides = array<i32>} : memref<1x4xf32, #tpu.memory_space<vmem>>, vector<1x4xf32>,
    } else {
    }
    return
  }
  func.func @transform_0(%arg0: i32) -> (i32, i32) {
    %c0_i32 = arith.constant 0 : i32
    %c0_i32_0 = arith.constant 0 : i32
    %c0_i32_1 = arith.constant 0 : i32
    return %c0_i32, %c0_i32_0 : i32, i32
  }
  func.func @transform_1(%arg0: i32) -> (i32, i32) {
    %c0_i32 = arith.constant 0 : i32
    %c0_i32_0 = arith.constant 0 : i32
    return %arg0, %c0_i32 : i32, i32
  }
  func.func @transform_2(%arg0: i32) -> (i32, i32) {
    %c0_i32 = arith.constant 0 : i32
    %c0_i32_0 = arith.constant 0 : i32
    return %arg0, %c0_i32 : i32, i32
  }
  func.func @transform_3(%arg0: i32) -> (i32, i32, i32) {
    %c0_i32 = arith.constant 0 : i32
    %c0_i32_0 = arith.constant 0 : i32
    %c0_i32_1 = arith.constant 0 : i32
    %c0_i32_2 = arith.constant 0 : i32
    return %c0_i32, %c0_i32_0, %c0_i32_1 : i32, i32, i32
  }
  func.func @transform_4(%arg0: i32) -> (i32, i32) {
    %c0_i32 = arith.constant 0 : i32
    %c0_i32_0 = arith.constant 0 : i32
    %c0_i32_1 = arith.constant 0 : i32
    return %c0_i32, %c0_i32_0 : i32, i32
  }
  func.func @transform_5(%arg0: i32) -> (i32, i32) {
    %c0_i32 = arith.constant 0 : i32
    %c0_i32_0 = arith.constant 0 : i32
    return %c0_i32, %arg0 : i32, i32
  }
  func.func @transform_6(%arg0: i32) -> (i32, i32) {
    %c0_i32 = arith.constant 0 : i32
    %c0_i32_0 = arith.constant 0 : i32
    %c0_i32_1 = arith.constant 0 : i32
    return %c0_i32, %c0_i32_0 : i32, i32
  }
  func.func @transform_7(%arg0: i32) -> (i32, i32) {
    %c0_i32 = arith.constant 0 : i32
    %c0_i32_0 = arith.constant 0 : i32
    %c0_i32_1 = arith.constant 0 : i32
    return %c0_i32, %c0_i32_0 : i32, i32
  }
  func.func @transform_8(%arg0: i32) -> (i32, i32) {
    %c0_i32 = arith.constant 0 : i32
    %c0_i32_0 = arith.constant 0 : i32
    %c0_i32_1 = arith.constant 0 : i32
    return %c0_i32, %c0_i32_0 : i32, i32
  }
  func.func @transform_9(%arg0: i32) -> (i32, i32) {
    %c0_i32 = arith.constant 0 : i32
    %c0_i32_0 = arith.constant 0 : i32
    %c0_i32_1 = arith.constant 0 : i32
    return %c0_i32, %c0_i32_0 : i32, i32
  }
}

</mosaic_0001>

<llo_original>
// kernel: att_dual_forward.3
$region0: #{att_dual_forward.3}
  #allocation0 [shape = 'u32[]', space=smem, size = 0x4, offset = 0x4, fixed_abs, tag = 'smem constant byte address 0x4 - core index']
  #allocation1 [shape = 'u32[144,128]{1,0:T(1,128)}', space=vmem, size = 0x12000, scoped, tag = 'internal scratch']
  %s0 = inlined_call_operand.vmem [shape: bf16[4,32], index: 0, kind: input, shape index: {}]
  %s1 = inlined_call_operand.vmem [shape: bf16[8,32], index: 1, kind: input, shape index: {}]
  %s2 = inlined_call_operand.vmem [shape: bf16[8,32], index: 2, kind: input, shape index: {}]
  %s3 = inlined_call_operand.vmem [shape: f32[4,32,4], index: 3, kind: input, shape index: {}]
  %s4 = inlined_call_operand.vmem [shape: f32[1,4], index: 4, kind: input, shape index: {}]
  %s5 = inlined_call_operand.vmem [shape: f32[4,8], index: 5, kind: output, shape index: {0}]
  %s6 = inlined_call_operand.vmem [shape: f32[4,1], index: 6, kind: output, shape index: {1}]
  %s7 = inlined_call_operand.vmem [shape: f32[4,1], index: 7, kind: output, shape index: {2}]
  %s8 = inlined_call_operand.hbm [shape: f32[4,32], index: 8, kind: output, shape index: {3}]
  %s9 = inlined_call_operand.hbm [shape: f32[1,4], index: 9, kind: output, shape index: {4}]
  %10 = xla_tuple %s5, %s6, %s7, %s8, %s9
  %s11 = sld [smem:[#allocation0]]
  $region70: #{att_dual_forward.3} parent=0
    _
  %s13 = ssub.s32 1, %s11
  %s14 = scalar_select 0, %s13, %s11
  $region1: #{att_dual_forward.3} parent=0
    #allocation2 [shape = 'u8[2048]{0}', space=vmem, size = 0x800, scoped, tag = 'output window, operand 3, single buffered']
    #allocation3 [shape = 's32[1]{0}', space=sflag, size = 0x4, scoped, tag = 'scoped memory for att_dual_forward.3']
    #allocation4 [shape = 'u8[512]{0}', space=vmem, size = 0x400, scoped, tag = 'output window, operand 4, single buffered']
    #allocation5 [shape = 's32[1]{0}', space=sflag, size = 0x4, scoped, tag = 'scoped memory for att_dual_forward.3']
    %15 = vsyncpa [#allocation3], 0
    %16 = vsyncpa [#allocation5], 0
    // Predicated region
    $region2: #{att_dual_forward.3} parent=1 // pred_check
      _
    $region3: #{att_dual_forward.3} parent=1 // pred_check_branch
      %18 = sbr.rel (0) target = $region5
    $region4: #{att_dual_forward.3} parent=1 // pred_region
      _
    $region5: #{att_dual_forward.3} parent=1 // pred_fallthru
      _
    // Predicated region
    $region6: #{att_dual_forward.3} parent=1 // pred_check
      _
    $region7: #{att_dual_forward.3} parent=1 // pred_check_branch
      %20 = sbr.rel (0) target = $region9
    $region8: #{att_dual_forward.3} parent=1 // pred_region
      _
    $region9: #{att_dual_forward.3} parent=1 // pred_fallthru
      _
    // Predicated region
    $region10: #{att_dual_forward.3} parent=1 // pred_check
      _
    $region11: #{att_dual_forward.3} parent=1 // pred_check_branch
      %22 = sbr.rel (0) target = $region13
    $region12: #{att_dual_forward.3} parent=1 // pred_region
      _
    $region13: #{att_dual_forward.3} parent=1 // pred_fallthru
      _
    // Predicated region
    $region14: #{att_dual_forward.3} parent=1 // pred_check
      _
    $region15: #{att_dual_forward.3} parent=1 // pred_check_branch
      %24 = sbr.rel (0) target = $region17
    $region16: #{att_dual_forward.3} parent=1 // pred_region
      _
    $region17: #{att_dual_forward.3} parent=1 // pred_fallthru
      _
    // Predicated region
    $region18: #{att_dual_forward.3} parent=1 // pred_check
      _
    $region19: #{att_dual_forward.3} parent=1 // pred_check_branch
      %26 = sbr.rel (0) target = $region21
    $region20: #{att_dual_forward.3} parent=1 // pred_region
      _
    $region21: #{att_dual_forward.3} parent=1 // pred_fallthru
      _
    %p28 = scmp.eq.s32.totalorder 0, 0
    // Predicated region
    $region22: #{att_dual_forward.3} parent=1 // pred_check
      %p29 = pneg %p28
    $region23: #{att_dual_forward.3} parent=1 // pred_check_branch
      %31 = sbr.rel (%p29) target = $region25
    $region24: #{att_dual_forward.3} parent=1 // pred_region
      %vm32 = vcmask 3072
      %33 = vst.msk [vmem:[%s6] sm:$0xf] %vm32, -inf
      %34 = vst.msk [vmem:[%s7] sm:$0xf] %vm32, 0.0
      %vm35 = vcmask 257024
      %36 = vst.msk [vmem:[#allocation2] sm:$0xf] %vm35, 0.0
    $region25: #{att_dual_forward.3} parent=1 // pred_fallthru
      _
    %v37 = vld [vmem:[%s1] sm:$0xf]
    %v38 = vld [vmem:[%s2] sm:$0xf]
    %v39 = vld [vmem:[%s0] sm:$0x3]
    %vm40 = vcmask 261120
    %v42 = vsel %vm40, %v39, 0
    %v45 = vsel %vm40, %v37, 0
    %47 = vmatprep.subr.bf16.mxu0 0
    %48 = vmatpush1.bf16.xpose.msra.mxu0 %v45
    %49 = vmatprep.subr.bf16.mxu0 0
    %50 = vmatpush1.bf16.xpose.msra.mxu0 0
    %51 = vmatprep.subr.bf16.mxu0 0
    %52 = vmatpush1.bf16.xpose.msra.mxu0 0
    %53 = vmatprep.subr.bf16.mxu0 0
    %54 = vmatpush1.bf16.xpose.msra.mxu0 0
    %55 = vmatprep.subr.bf16.mxu0 0
    %56 = vmatpush1.bf16.xpose.msra.mxu0 0
    %57 = vmatprep.subr.bf16.mxu0 0
    %58 = vmatpush1.bf16.xpose.msra.mxu0 0
    %59 = vmatprep.subr.bf16.mxu0 0
    %60 = vmatpush1.bf16.xpose.msra.mxu0 0
    %61 = vmatprep.subr.bf16.mxu0 0
    %62 = vmatpush1.bf16.xpose.msra.mxu0 0
    %63 = vmatprep.subr.bf16.mxu0 0
    %64 = vmatpush1.bf16.xpose.msra.mxu0 0
    %65 = vmatprep.subr.bf16.mxu0 0
    %66 = vmatpush1.bf16.xpose.msra.mxu0 0
    %67 = vmatprep.subr.bf16.mxu0 0
    %68 = vmatpush1.bf16.xpose.msra.mxu0 0
    %69 = vmatprep.subr.bf16.mxu0 0
    %70 = vmatpush1.bf16.xpose.msra.mxu0 0
    %71 = vmatprep.subr.bf16.mxu0 0
    %72 = vmatpush1.bf16.xpose.msra.mxu0 0
    %73 = vmatprep.subr.bf16.mxu0 0
    %74 = vmatpush1.bf16.xpose.msra.mxu0 0
    %75 = vmatprep.subr.bf16.mxu0 0
    %76 = vmatpush1.bf16.xpose.msra.mxu0 0
    %77 = vmatprep.subr.bf16.mxu0 0
    %78 = vmatpush1.bf16.xpose.msra.mxu0 0
    %79 = vmatprep.mubr.bf16.mxu0 0
    %80 = vmatmul.mubr.bf16.gmra.mrb[0].mxu0 %v42
    %v81 = vpop.f32.mrb[0].mxu0
    %v82 = vadd.f32 0.0, %v81
    %v83 = vpop.f32.mrb[0].mxu0
    %v84 = vpop.f32.mrb[0].mxu0
    %v85 = vpop.f32.mrb[0].mxu0
    %86 = vdwg.mxu0
    %v87 = vmul.f32 %v82, 0.17677669
    %vm88 = vcmask 60416
    %89 = vst.msk [vmem:[%s5] sm:$0xf] %vm88, %v87
    %v90 = vld [vmem:[%s6] sm:$0xf]
    %v91 = vsel %vm88, %v87, -inf
    %92 = vmax.xlane.f32.xlu0 %v91
    %v93 = vpop.xlane.xlu0 %92
    %v94 = vmax.f32 %v90, %v93
    %v95 = vsub.f32 %v90, %v94
    %v96 = vmul.f32 %v95, 1.442695
    %v97 = vpow.pop %v96
    %99 = vset.pattern.permute.xlu0 0
    %100 = vperm.xlu0 %99, %v94
    %v101 = vpop.permute.xlu0 %100
    %v103 = vsub.f32 %v87, %v101
    %v104 = vmul.f32 %v103, 1.442695
    %v105 = vpow.pop %v104
    %v106 = vld [vmem:[%s7] sm:$0xf]
    %v107 = vmul.f32 %v97, %v106
    %v108 = vsel %vm88, %v105, 0.0
    %109 = vadd.xlane.f32.xlu0 %v108
    %v110 = vpop.xlane.xlu0 %109
    %v111 = vadd.f32 %v107, %v110
    %vm112 = vcmask 3072
    %113 = vst.msk [vmem:[%s7] sm:$0xf] %vm112, %v111
    %v114 = vld [vmem:[#allocation2] sm:$0xf]
    %116 = vset.pattern.permute.xlu0 0
    %117 = vperm.xlu0 %116, %v97
    %v118 = vpop.permute.xlu0 %117
    %v120 = vmul.f32 %v118, %v114
    %v121 = vpack.c.bf16 %v105, %v105
    %vm122 = vcmask 64512
    %v124 = vsel %vm122, %v121, 0
    %vm126 = vcmask 1043456
    %v128 = vsel %vm126, %v38, 0
    %130 = vmatprep.subr.bf16.mxu0 0
    %131 = vmatpush1.bf16.msra.mxu0 %v128
    %132 = vmatprep.subr.bf16.mxu0 0
    %133 = vmatpush1.bf16.msra.mxu0 0
    %134 = vmatprep.subr.bf16.mxu0 0
    %135 = vmatpush1.bf16.msra.mxu0 0
    %136 = vmatprep.subr.bf16.mxu0 0
    %137 = vmatpush1.bf16.msra.mxu0 0
    %138 = vmatprep.subr.bf16.mxu0 0
    %139 = vmatpush1.bf16.msra.mxu0 0
    %140 = vmatprep.subr.bf16.mxu0 0
    %141 = vmatpush1.bf16.msra.mxu0 0
    %142 = vmatprep.subr.bf16.mxu0 0
    %143 = vmatpush1.bf16.msra.mxu0 0
    %144 = vmatprep.subr.bf16.mxu0 0
    %145 = vmatpush1.bf16.msra.mxu0 0
    %146 = vmatprep.subr.bf16.mxu0 0
    %147 = vmatpush1.bf16.msra.mxu0 0
    %148 = vmatprep.subr.bf16.mxu0 0
    %149 = vmatpush1.bf16.msra.mxu0 0
    %150 = vmatprep.subr.bf16.mxu0 0
    %151 = vmatpush1.bf16.msra.mxu0 0
    %152 = vmatprep.subr.bf16.mxu0 0
    %153 = vmatpush1.bf16.msra.mxu0 0
    %154 = vmatprep.subr.bf16.mxu0 0
    %155 = vmatpush1.bf16.msra.mxu0 0
    %156 = vmatprep.subr.bf16.mxu0 0
    %157 = vmatpush1.bf16.msra.mxu0 0
    %158 = vmatprep.subr.bf16.mxu0 0
    %159 = vmatpush1.bf16.msra.mxu0 0
    %160 = vmatprep.subr.bf16.mxu0 0
    %161 = vmatpush1.bf16.msra.mxu0 0
    %162 = vmatprep.mubr.bf16.mxu0 0
    %163 = vmatmul.mubr.bf16.gmra.mrb[0].mxu0 %v124
    %v164 = vpop.f32.mrb[0].mxu0
    %v165 = vadd.f32 0.0, %v164
    %v166 = vpop.f32.mrb[0].mxu0
    %v167 = vpop.f32.mrb[0].mxu0
    %v168 = vpop.f32.mrb[0].mxu0
    %169 = vdwg.mxu0
    %v170 = vadd.f32 %v120, %v165
    %vm171 = vcmask 257024
    %172 = vst.msk [vmem:[#allocation2] sm:$0xf] %vm171, %v170
    %173 = vst.msk [vmem:[%s6] sm:$0xf] %vm112, %v94
    // Predicated region
    $region26: #{att_dual_forward.3} parent=1 // pred_check
      %p174 = pneg %p28
    $region27: #{att_dual_forward.3} parent=1 // pred_check_branch
      %176 = sbr.rel (%p174) target = $region29
    $region28: #{att_dual_forward.3} parent=1 // pred_region
      %v177 = vld [vmem:[#allocation2] sm:$0xf]
      %v178 = vld [vmem:[%s7] sm:$0xf]
      %v179 = vrcp.pop %v178
      %181 = vset.pattern.permute.xlu0 0
      %182 = vperm.xlu0 %181, %v179
      %v183 = vpop.permute.xlu0 %182
      %v185 = vmul.f32 %v177, %v183
      %186 = vst.msk [vmem:[#allocation2] sm:$0xf] %vm171, %v185
      %v187 = vlaneseq
      %v188 = vshrl.u32 %v187, 7
      %v189 = vsub.s32 0, %v188
      %v190 = vrot.slane %v185, %v189
      %192 = vbcast.lane.b32.xlu0 %v190, 256
      %v193 = vpop.permute.xlu0 %192
      %s195 = sor.u32 256, 8
      %196 = vbcast.lane.b32.xlu0 %v190, %s195
      %v197 = vpop.permute.xlu0 %196
      %s199 = sor.u32 256, 16
      %200 = vbcast.lane.b32.xlu0 %v190, %s199
      %v201 = vpop.permute.xlu0 %200
      %s203 = sor.u32 256, 24
      %204 = vbcast.lane.b32.xlu0 %v190, %s203
      %v205 = vpop.permute.xlu0 %204
      %v206 = vlaneseq
      %v207 = vshrl.u32 %v206, 7
      %v208 = vsub.s32 1, %v207
      %v209 = vrot.slane %v185, %v208
      %211 = vbcast.lane.b32.xlu0 %v209, 256
      %v212 = vpop.permute.xlu0 %211
      %s214 = sor.u32 256, 8
      %215 = vbcast.lane.b32.xlu0 %v209, %s214
      %v216 = vpop.permute.xlu0 %215
      %s218 = sor.u32 256, 16
      %219 = vbcast.lane.b32.xlu0 %v209, %s218
      %v220 = vpop.permute.xlu0 %219
      %s222 = sor.u32 256, 24
      %223 = vbcast.lane.b32.xlu0 %v209, %s222
      %v224 = vpop.permute.xlu0 %223
      %v225 = vlaneseq
      %v226 = vshrl.u32 %v225, 7
      %v227 = vsub.s32 2, %v226
      %v228 = vrot.slane %v185, %v227
      %230 = vbcast.lane.b32.xlu0 %v228, 256
      %v231 = vpop.permute.xlu0 %230
      %s233 = sor.u32 256, 8
      %234 = vbcast.lane.b32.xlu0 %v228, %s233
      %v235 = vpop.permute.xlu0 %234
      %s237 = sor.u32 256, 16
      %238 = vbcast.lane.b32.xlu0 %v228, %s237
      %v239 = vpop.permute.xlu0 %238
      %s241 = sor.u32 256, 24
      %242 = vbcast.lane.b32.xlu0 %v228, %s241
      %v243 = vpop.permute.xlu0 %242
      %v244 = vlaneseq
      %v245 = vshrl.u32 %v244, 7
      %v246 = vsub.s32 3, %v245
      %v247 = vrot.slane %v185, %v246
      %249 = vbcast.lane.b32.xlu0 %v247, 256
      %v250 = vpop.permute.xlu0 %249
      %s252 = sor.u32 256, 8
      %253 = vbcast.lane.b32.xlu0 %v247, %s252
      %v254 = vpop.permute.xlu0 %253
      %s256 = sor.u32 256, 16
      %257 = vbcast.lane.b32.xlu0 %v247, %s256
      %v258 = vpop.permute.xlu0 %257
      %s260 = sor.u32 256, 24
      %261 = vbcast.lane.b32.xlu0 %v247, %s260
      %v262 = vpop.permute.xlu0 %261
      %v263 = vld [vmem:[%s3] sm:$0xff]
      %v264 = vld [vmem:[%s3 + $0x8] sm:$0xff]
      %v265 = vld [vmem:[%s3 + $0x10] sm:$0xff]
      %v266 = vld [vmem:[%s3 + $0x18] sm:$0xff]
      %v267 = vld [vmem:[%s3 + $0x20] sm:$0xff]
      %v268 = vld [vmem:[%s3 + $0x28] sm:$0xff]
      %v269 = vld [vmem:[%s3 + $0x30] sm:$0xff]
      %v270 = vld [vmem:[%s3 + $0x38] sm:$0xff]
      %v271 = vld [vmem:[%s3 + $0x40] sm:$0xff]
      %v272 = vld [vmem:[%s3 + $0x48] sm:$0xff]
      %v273 = vld [vmem:[%s3 + $0x50] sm:$0xff]
      %v274 = vld [vmem:[%s3 + $0x58] sm:$0xff]
      %v275 = vld [vmem:[%s3 + $0x60] sm:$0xff]
      %v276 = vld [vmem:[%s3 + $0x68] sm:$0xff]
      %v277 = vld [vmem:[%s3 + $0x70] sm:$0xff]
      %v278 = vld [vmem:[%s3 + $0x78] sm:$0xff]
      %v279 = vmul.f32 %v193, %v263
      %v280 = vmul.f32 %v197, %v264
      %v281 = vmul.f32 %v201, %v265
      %v282 = vmul.f32 %v205, %v266
      %v283 = vmul.f32 %v212, %v267
      %v284 = vmul.f32 %v216, %v268
      %v285 = vmul.f32 %v220, %v269
      %v286 = vmul.f32 %v224, %v270
      %v287 = vmul.f32 %v231, %v271
      %v288 = vmul.f32 %v235, %v272
      %v289 = vmul.f32 %v239, %v273
      %v290 = vmul.f32 %v243, %v274
      %v291 = vmul.f32 %v250, %v275
      %v292 = vmul.f32 %v254, %v276
      %v293 = vmul.f32 %v258, %v277
      %v294 = vmul.f32 %v262, %v278
      %vm295 = vcmask 31744
      %v296 = vsel %vm295, %v279, 0.0
      %v297 = vsel %vm295, %v283, 0.0
      %v298 = vadd.f32 %v296, %v297
      %v299 = vsel %vm295, %v287, 0.0
      %v300 = vadd.f32 %v298, %v299
      %v301 = vsel %vm295, %v291, 0.0
      %v302 = vadd.f32 %v300, %v301
      %v303 = vsel %vm295, %v280, 0.0
      %v304 = vsel %vm295, %v284, 0.0
      %v305 = vadd.f32 %v303, %v304
      %v306 = vsel %vm295, %v288, 0.0
      %v307 = vadd.f32 %v305, %v306
      %v308 = vsel %vm295, %v292, 0.0
      %v309 = vadd.f32 %v307, %v308
      %v310 = vsel %vm295, %v281, 0.0
      %v311 = vsel %vm295, %v285, 0.0
      %v312 = vadd.f32 %v310, %v311
      %v313 = vsel %vm295, %v289, 0.0
      %v314 = vadd.f32 %v312, %v313
      %v315 = vsel %vm295, %v293, 0.0
      %v316 = vadd.f32 %v314, %v315
      %v317 = vsel %vm295, %v282, 0.0
      %v318 = vsel %vm295, %v286, 0.0
      %v319 = vadd.f32 %v317, %v318
      %v320 = vsel %vm295, %v290, 0.0
      %v321 = vadd.f32 %v319, %v320
      %v322 = vsel %vm295, %v294, 0.0
      %v323 = vadd.f32 %v321, %v322
      %v324 = vsel %vm295, %v302, 0.0
      %v325 = vsel %vm295, %v309, 0.0
      %v326 = vadd.f32 %v324, %v325
      %v327 = vsel %vm295, %v316, 0.0
      %v328 = vadd.f32 %v326, %v327
      %v329 = vsel %vm295, %v323, 0.0
      %v330 = vadd.f32 %v328, %v329
      %v331 = vrot.slane %v330, 4
      %v332 = vadd.f32 %v330, %v331
      %v333 = vrot.slane %v332, 2
      %v334 = vadd.f32 %v332, %v333
      %v335 = vrot.slane %v334, 1
      %v336 = vadd.f32 %v334, %v335
      %v337 = vld [vmem:[%s4] sm:$0x1]
      %v338 = vadd.f32 %v336, %v337
      %vm339 = vcmask 24576
      %340 = vst.msk [vmem:[#allocation4] sm:$0x1] %vm339, %v338
    $region29: #{att_dual_forward.3} parent=1 // pred_fallthru
      _
    // Predicated region
    $region30: #{att_dual_forward.3} parent=1 // pred_check
      _
    $region31: #{att_dual_forward.3} parent=1 // pred_check_branch
      %342 = sbr.rel (0) target = $region33
    $region32: #{att_dual_forward.3} parent=1 // pred_region
      _
    $region33: #{att_dual_forward.3} parent=1 // pred_fallthru
      _
    // Predicated region
    $region34: #{att_dual_forward.3} parent=1 // pred_check
      _
    $region35: #{att_dual_forward.3} parent=1 // pred_check_branch
      %344 = sbr.rel (0) target = $region37
    $region36: #{att_dual_forward.3} parent=1 // pred_region
      _
    $region37: #{att_dual_forward.3} parent=1 // pred_fallthru
      _
    // Predicated region
    $region38: #{att_dual_forward.3} parent=1 // pred_check
      _
    $region39: #{att_dual_forward.3} parent=1 // pred_check_branch
      %346 = sbr.rel (0) target = $region41
    $region40: #{att_dual_forward.3} parent=1 // pred_region
      _
    $region41: #{att_dual_forward.3} parent=1 // pred_fallthru
      _
    // Predicated region
    $region42: #{att_dual_forward.3} parent=1 // pred_check
      _
    $region43: #{att_dual_forward.3} parent=1 // pred_check_branch
      %348 = sbr.rel (0) target = $region45
    $region44: #{att_dual_forward.3} parent=1 // pred_region
      %s350 = ssub.s32 64, 64
      %351 = vsyncadd [#allocation3], %s350
      %s353 = sshll.u32 [#allocation2], 4
      %s354 = int_to_ptr.vmem [resolvable:$true] %s353
      %356 = dma.vmem_to_hbm [thread:$0]  %s354, 64, %s8, [#allocation3]
    $region45: #{att_dual_forward.3} parent=1 // pred_fallthru
      _
    // Predicated region
    $region46: #{att_dual_forward.3} parent=1 // pred_check
      _
    $region47: #{att_dual_forward.3} parent=1 // pred_check_branch
      %358 = sbr.rel (0) target = $region49
    $region48: #{att_dual_forward.3} parent=1 // pred_region
      %s360 = ssub.s32 16, 16
      %361 = vsyncadd [#allocation5], %s360
      %s363 = sshll.u32 [#allocation4], 4
      %s364 = int_to_ptr.vmem [resolvable:$true] %s363
      %366 = dma.vmem_to_hbm [thread:$0]  %s364, 16, %s9, [#allocation5]
    $region49: #{att_dual_forward.3} parent=1 // pred_fallthru
      _
    // Predicated region
    $region50: #{att_dual_forward.3} parent=1 // pred_check
      _
    $region51: #{att_dual_forward.3} parent=1 // pred_check_branch
      %368 = sbr.rel (0) target = $region53
    $region52: #{att_dual_forward.3} parent=1 // pred_region
      _
    $region53: #{att_dual_forward.3} parent=1 // pred_fallthru
      _
    // Predicated region
    $region54: #{att_dual_forward.3} parent=1 // pred_check
      _
    $region55: #{att_dual_forward.3} parent=1 // pred_check_branch
      %370 = sbr.rel (0) target = $region57
    $region56: #{att_dual_forward.3} parent=1 // pred_region
      _
    $region57: #{att_dual_forward.3} parent=1 // pred_fallthru
      _
    // Predicated region
    $region58: #{att_dual_forward.3} parent=1 // pred_check
      _
    $region59: #{att_dual_forward.3} parent=1 // pred_check_branch
      %372 = sbr.rel (0) target = $region61
    $region60: #{att_dual_forward.3} parent=1 // pred_region
      _
    $region61: #{att_dual_forward.3} parent=1 // pred_fallthru
      _
    // Predicated region
    $region62: #{att_dual_forward.3} parent=1 // pred_check
      _
    $region63: #{att_dual_forward.3} parent=1 // pred_check_branch
      %374 = sbr.rel (0) target = $region65
    $region64: #{att_dual_forward.3} parent=1 // pred_region
      %375 = dma.done [#allocation3], 64
    $region65: #{att_dual_forward.3} parent=1 // pred_fallthru
      _
    // Predicated region
    $region66: #{att_dual_forward.3} parent=1 // pred_check
      _
    $region67: #{att_dual_forward.3} parent=1 // pred_check_branch
      %377 = sbr.rel (0) target = $region69
    $region68: #{att_dual_forward.3} parent=1 // pred_region
      %378 = dma.done [#allocation5], 16
    $region69: #{att_dual_forward.3} parent=1 // pred_fallthru
      _
    %379 = vsyncpa [#allocation3], 1
    %380 = vsyncpa [#allocation5], 1

// kernel: att_dual_forward.2
$region0: #{att_dual_forward.2}
  #allocation0 [shape = 'u32[]', space=smem, size = 0x4, offset = 0x4, fixed_abs, tag = 'smem constant byte address 0x4 - core index']
  #allocation1 [shape = 'u32[144,128]{1,0:T(1,128)}', space=vmem, size = 0x12000, scoped, tag = 'internal scratch']
  %s0 = inlined_call_operand.hbm [shape: f32[8,32], index: 0, kind: input, shape index: {}]
  %s1 = inlined_call_operand.vmem [shape: bf16[32,32], index: 1, kind: input, shape index: {}]
  %s2 = inlined_call_operand.vmem [shape: f32[1,32], index: 2, kind: input, shape index: {}]
  %s3 = inlined_call_operand.vmem [shape: f32[1,32], index: 3, kind: input, shape index: {}]
  %s4 = inlined_call_operand.vmem [shape: f32[1,32], index: 4, kind: input, shape index: {}]
  %s5 = inlined_call_operand.vmem [shape: bf16[32,64], index: 5, kind: input, shape index: {}]
  %s6 = inlined_call_operand.vmem [shape: f32[1,64], index: 6, kind: input, shape index: {}]
  %s7 = inlined_call_operand.vmem [shape: f32[1,64], index: 7, kind: input, shape index: {}]
  %s8 = inlined_call_operand.vmem [shape: f32[1,64], index: 8, kind: input, shape index: {}]
  %s9 = inlined_call_operand.vmem [shape: bf16[8,32], index: 9, kind: output, shape index: {0}]
  %s10 = inlined_call_operand.vmem [shape: bf16[8,32], index: 10, kind: output, shape index: {1}]
  %11 = xla_tuple %s9, %s10
  %s12 = sld [smem:[#allocation0]]
  $region58: #{att_dual_forward.2} parent=0
    _
  %s14 = ssub.s32 1, %s12
  %s15 = scalar_select 0, %s14, %s12
  $region1: #{att_dual_forward.2} parent=0
    #allocation2 [shape = 'u8[4096]{0}', space=vmem, size = 0x1000, scoped, tag = 'input window, operand 0, single buffered']
    #allocation3 [shape = 's32[1]{0}', space=sflag, size = 0x4, scoped, tag = 'scoped memory for att_dual_forward.2']
    %16 = vsyncpa [#allocation3], 0
    // Predicated region
    $region2: #{att_dual_forward.2} parent=1 // pred_check
      _
    $region3: #{att_dual_forward.2} parent=1 // pred_check_branch
      %18 = sbr.rel (0) target = $region5
    $region4: #{att_dual_forward.2} parent=1 // pred_region
      %s20 = ssub.s32 128, 128
      %21 = vsyncadd [#allocation3], %s20
      %s23 = sshll.u32 [#allocation2], 4
      %s24 = int_to_ptr.vmem [resolvable:$true] %s23
      %26 = dma.hbm_to_vmem [thread:$0]  %s0, 128, %s24, [#allocation3]
    $region5: #{att_dual_forward.2} parent=1 // pred_fallthru
      _
    // Predicated region
    $region6: #{att_dual_forward.2} parent=1 // pred_check
      _
    $region7: #{att_dual_forward.2} parent=1 // pred_check_branch
      %28 = sbr.rel (0) target = $region9
    $region8: #{att_dual_forward.2} parent=1 // pred_region
      _
    $region9: #{att_dual_forward.2} parent=1 // pred_fallthru
      _
    // Predicated region
    $region10: #{att_dual_forward.2} parent=1 // pred_check
      _
    $region11: #{att_dual_forward.2} parent=1 // pred_check_branch
      %30 = sbr.rel (0) target = $region13
    $region12: #{att_dual_forward.2} parent=1 // pred_region
      _
    $region13: #{att_dual_forward.2} parent=1 // pred_fallthru
      _
    // Predicated region
    $region14: #{att_dual_forward.2} parent=1 // pred_check
      _
    $region15: #{att_dual_forward.2} parent=1 // pred_check_branch
      %32 = sbr.rel (0) target = $region17
    $region16: #{att_dual_forward.2} parent=1 // pred_region
      _
    $region17: #{att_dual_forward.2} parent=1 // pred_fallthru
      _
    // Predicated region
    $region18: #{att_dual_forward.2} parent=1 // pred_check
      _
    $region19: #{att_dual_forward.2} parent=1 // pred_check_branch
      %34 = sbr.rel (0) target = $region21
    $region20: #{att_dual_forward.2} parent=1 // pred_region
      _
    $region21: #{att_dual_forward.2} parent=1 // pred_fallthru
      _
    // Predicated region
    $region22: #{att_dual_forward.2} parent=1 // pred_check
      _
    $region23: #{att_dual_forward.2} parent=1 // pred_check_branch
      %36 = sbr.rel (0) target = $region25
    $region24: #{att_dual_forward.2} parent=1 // pred_region
      _
    $region25: #{att_dual_forward.2} parent=1 // pred_fallthru
      _
    // Predicated region
    $region26: #{att_dual_forward.2} parent=1 // pred_check
      _
    $region27: #{att_dual_forward.2} parent=1 // pred_check_branch
      %38 = sbr.rel (0) target = $region29
    $region28: #{att_dual_forward.2} parent=1 // pred_region
      _
    $region29: #{att_dual_forward.2} parent=1 // pred_fallthru
      _
    // Predicated region
    $region30: #{att_dual_forward.2} parent=1 // pred_check
      _
    $region31: #{att_dual_forward.2} parent=1 // pred_check_branch
      %40 = sbr.rel (0) target = $region33
    $region32: #{att_dual_forward.2} parent=1 // pred_region
      _
    $region33: #{att_dual_forward.2} parent=1 // pred_fallthru
      _
    // Predicated region
    $region34: #{att_dual_forward.2} parent=1 // pred_check
      _
    $region35: #{att_dual_forward.2} parent=1 // pred_check_branch
      %42 = sbr.rel (0) target = $region37
    $region36: #{att_dual_forward.2} parent=1 // pred_region
      _
    $region37: #{att_dual_forward.2} parent=1 // pred_fallthru
      _
    // Predicated region
    $region38: #{att_dual_forward.2} parent=1 // pred_check
      _
    $region39: #{att_dual_forward.2} parent=1 // pred_check_branch
      %44 = sbr.rel (0) target = $region41
    $region40: #{att_dual_forward.2} parent=1 // pred_region
      %45 = dma.done [#allocation3], 128
    $region41: #{att_dual_forward.2} parent=1 // pred_fallthru
      _
    %v47 = vld [vmem:[#allocation2] sm:$0xff]
    %v48 = vpack.c.bf16 %v47, %v47
    %v49 = vld [vmem:[%s1] sm:$0xf]
    %v50 = vld [vmem:[%s1 + $0x4] sm:$0xf]
    %v51 = vld [vmem:[%s1 + $0x8] sm:$0xf]
    %v52 = vld [vmem:[%s1 + $0xc] sm:$0xf]
    %v53 = vld [vmem:[%s2] sm:$0x1]
    %v55 = vlaneseq
    %v56 = vshrl.u32 %v55, 7
    %v57 = vsub.s32 0, %v56
    %v58 = vrot.slane %v53, %v57
    %v64 = vunpack.c.l.b16 %v49
    %v65 = vunpack.c.l.b16 %v50
    %v66 = vunpack.c.l.b16 %v51
    %v67 = vunpack.c.l.b16 %v52
    %v68 = vpack.c.b16 %v65, %v64
    %v69 = vpack.c.b16 %v67, %v66
    %vm72 = vcmask 261120
    %v74 = vsel %vm72, %v48, 0
    %76 = vmatprep.subr.bf16.mxu0 0
    %77 = vmatpush1.bf16.msra.mxu0 %v68
    %78 = vmatprep.subr.bf16.mxu0 0
    %79 = vmatpush1.bf16.msra.mxu0 %v69
    %80 = vmatprep.subr.bf16.mxu0 0
    %81 = vmatpush1.bf16.msra.mxu0 0
    %82 = vmatprep.subr.bf16.mxu0 0
    %83 = vmatpush1.bf16.msra.mxu0 0
    %84 = vmatprep.subr.bf16.mxu0 0
    %85 = vmatpush1.bf16.msra.mxu0 0
    %86 = vmatprep.subr.bf16.mxu0 0
    %87 = vmatpush1.bf16.msra.mxu0 0
    %88 = vmatprep.subr.bf16.mxu0 0
    %89 = vmatpush1.bf16.msra.mxu0 0
    %90 = vmatprep.subr.bf16.mxu0 0
    %91 = vmatpush1.bf16.msra.mxu0 0
    %92 = vmatprep.subr.bf16.mxu0 0
    %93 = vmatpush1.bf16.msra.mxu0 0
    %94 = vmatprep.subr.bf16.mxu0 0
    %95 = vmatpush1.bf16.msra.mxu0 0
    %96 = vmatprep.subr.bf16.mxu0 0
    %97 = vmatpush1.bf16.msra.mxu0 0
    %98 = vmatprep.subr.bf16.mxu0 0
    %99 = vmatpush1.bf16.msra.mxu0 0
    %100 = vmatprep.subr.bf16.mxu0 0
    %101 = vmatpush1.bf16.msra.mxu0 0
    %102 = vmatprep.subr.bf16.mxu0 0
    %103 = vmatpush1.bf16.msra.mxu0 0
    %104 = vmatprep.subr.bf16.mxu0 0
    %105 = vmatpush1.bf16.msra.mxu0 0
    %106 = vmatprep.subr.bf16.mxu0 0
    %107 = vmatpush1.bf16.msra.mxu0 0
    %108 = vmatprep.mubr.bf16.mxu0 0
    %109 = vmatmul.mubr.bf16.gmra.mrb[0].mxu0 %v74
    %v110 = vpop.f32.mrb[0].mxu0
    %v111 = vadd.f32 %v58, %v110
    %v112 = vpop.f32.mrb[0].mxu0
    %v113 = vpop.f32.mrb[0].mxu0
    %v114 = vpop.f32.mrb[0].mxu0
    %115 = vdwg.mxu0
    %v116 = vld [vmem:[%s3] sm:$0x1]
    %v117 = vld [vmem:[%s4] sm:$0x1]
    %v118 = vsel %vm72, %v111, 0.0
    %119 = vadd.xlane.f32.xlu0 %v118
    %v120 = vpop.xlane.xlu0 %119
    %v121 = vrcp.pop 32.0
    %v122 = vmul.f32 %v120, %v121
    %v123 = vsub.f32 %v111, %v122
    %v124 = vmul.f32 %v123, %v123
    %v125 = vsel %vm72, %v124, 0.0
    %126 = vadd.xlane.f32.xlu0 %v125
    %v127 = vpop.xlane.xlu0 %126
    %v128 = vmul.f32 %v127, %v121
    %v129 = vadd.f32 %v128, 1e-05
    %v130 = vrsqrt.pop %v129
    %v131 = vmul.f32 %v123, %v130
    %v133 = vlaneseq
    %v134 = vshrl.u32 %v133, 7
    %v135 = vsub.s32 0, %v134
    %v136 = vrot.slane %v116, %v135
    %v138 = vmul.f32 %v131, %v136
    %v140 = vlaneseq
    %v141 = vshrl.u32 %v140, 7
    %v142 = vsub.s32 0, %v141
    %v143 = vrot.slane %v117, %v142
    %v145 = vadd.f32 %v138, %v143
    %v146 = vmul.f32 %v145, 0.5
    %v147 = vmul.f32 %v145, 0.70710677
    %v148 = verf.f32.pop %v147
    %v149 = vadd.f32 %v148, 1.0
    %v150 = vmul.f32 %v146, %v149
    %v151 = vpack.c.bf16 %v150, %v150
    %v152 = vld [vmem:[%s5] sm:$0xf]
    %v153 = vld [vmem:[%s5 + $0x4] sm:$0xf]
    %v154 = vld [vmem:[%s5 + $0x8] sm:$0xf]
    %v155 = vld [vmem:[%s5 + $0xc] sm:$0xf]
    %v156 = vld [vmem:[%s6] sm:$0x1]
    %v158 = vlaneseq
    %v159 = vshrl.u32 %v158, 7
    %v160 = vsub.s32 0, %v159
    %v161 = vrot.slane %v156, %v160
    %v167 = vunpack.c.l.b16 %v152
    %v168 = vunpack.c.l.b16 %v153
    %v169 = vunpack.c.l.b16 %v154
    %v170 = vunpack.c.l.b16 %v155
    %v171 = vpack.c.b16 %v168, %v167
    %v172 = vpack.c.b16 %v170, %v169
    %v176 = vsel %vm72, %v151, 0
    %178 = vmatprep.subr.bf16.mxu0 0
    %179 = vmatpush1.bf16.msra.mxu0 %v171
    %180 = vmatprep.subr.bf16.mxu0 0
    %181 = vmatpush1.bf16.msra.mxu0 %v172
    %182 = vmatprep.subr.bf16.mxu0 0
    %183 = vmatpush1.bf16.msra.mxu0 0
    %184 = vmatprep.subr.bf16.mxu0 0
    %185 = vmatpush1.bf16.msra.mxu0 0
    %186 = vmatprep.subr.bf16.mxu0 0
    %187 = vmatpush1.bf16.msra.mxu0 0
    %188 = vmatprep.subr.bf16.mxu0 0
    %189 = vmatpush1.bf16.msra.mxu0 0
    %190 = vmatprep.subr.bf16.mxu0 0
    %191 = vmatpush1.bf16.msra.mxu0 0
    %192 = vmatprep.subr.bf16.mxu0 0
    %193 = vmatpush1.bf16.msra.mxu0 0
    %194 = vmatprep.subr.bf16.mxu0 0
    %195 = vmatpush1.bf16.msra.mxu0 0
    %196 = vmatprep.subr.bf16.mxu0 0
    %197 = vmatpush1.bf16.msra.mxu0 0
    %198 = vmatprep.subr.bf16.mxu0 0
    %199 = vmatpush1.bf16.msra.mxu0 0
    %200 = vmatprep.subr.bf16.mxu0 0
    %201 = vmatpush1.bf16.msra.mxu0 0
    %202 = vmatprep.subr.bf16.mxu0 0
    %203 = vmatpush1.bf16.msra.mxu0 0
    %204 = vmatprep.subr.bf16.mxu0 0
    %205 = vmatpush1.bf16.msra.mxu0 0
    %206 = vmatprep.subr.bf16.mxu0 0
    %207 = vmatpush1.bf16.msra.mxu0 0
    %208 = vmatprep.subr.bf16.mxu0 0
    %209 = vmatpush1.bf16.msra.mxu0 0
    %210 = vmatprep.mubr.bf16.mxu0 0
    %211 = vmatmul.mubr.bf16.gmra.mrb[0].mxu0 %v176
    %v212 = vpop.f32.mrb[0].mxu0
    %v213 = vadd.f32 %v161, %v212
    %v214 = vpop.f32.mrb[0].mxu0
    %v215 = vpop.f32.mrb[0].mxu0
    %v216 = vpop.f32.mrb[0].mxu0
    %217 = vdwg.mxu0
    %v218 = vld [vmem:[%s7] sm:$0x1]
    %v219 = vld [vmem:[%s8] sm:$0x1]
    %v220 = vsel %vm72, %v213, 0.0
    %221 = vadd.xlane.f32.xlu0 %v220
    %v222 = vpop.xlane.xlu0 %221
    %v223 = vmul.f32 %v222, %v121
    %v224 = vsub.f32 %v213, %v223
    %v225 = vmul.f32 %v224, %v224
    %v226 = vsel %vm72, %v225, 0.0
    %227 = vadd.xlane.f32.xlu0 %v226
    %v228 = vpop.xlane.xlu0 %227
    %v229 = vmul.f32 %v228, %v121
    %v230 = vadd.f32 %v229, 1e-05
    %v231 = vrsqrt.pop %v230
    %v232 = vmul.f32 %v224, %v231
    %v234 = vlaneseq
    %v235 = vshrl.u32 %v234, 7
    %v236 = vsub.s32 0, %v235
    %v237 = vrot.slane %v218, %v236
    %v239 = vmul.f32 %v232, %v237
    %v241 = vlaneseq
    %v242 = vshrl.u32 %v241, 7
    %v243 = vsub.s32 0, %v242
    %v244 = vrot.slane %v219, %v243
    %v246 = vadd.f32 %v239, %v244
    %v247 = vmul.f32 %v246, 0.5
    %v248 = vmul.f32 %v246, 0.70710677
    %v249 = verf.f32.pop %v248
    %v250 = vadd.f32 %v249, 1.0
    %v251 = vmul.f32 %v247, %v250
    %v252 = vpack.c.bf16 %v251, %v251
    %vm253 = vcmask 257024
    %254 = vst.msk [vmem:[%s9] sm:$0xf] %vm253, %v252
    %v255 = vld [vmem:[%s7] sm:$0x1]
    %v256 = vld [vmem:[%s8] sm:$0x1]
    %258 = vrot.lane.b32.xlu0 %v213, 96
    %v259 = vpop.permute.xlu0 %258
    %v261 = vsel %vm72, %v259, 0.0
    %262 = vadd.xlane.f32.xlu0 %v261
    %v263 = vpop.xlane.xlu0 %262
    %v264 = vmul.f32 %v263, %v121
    %v265 = vsub.f32 %v213, %v264
    %v266 = vmul.f32 %v265, %v265
    %268 = vrot.lane.b32.xlu0 %v266, 96
    %v269 = vpop.permute.xlu0 %268
    %v271 = vsel %vm72, %v269, 0.0
    %272 = vadd.xlane.f32.xlu0 %v271
    %v273 = vpop.xlane.xlu0 %272
    %v274 = vmul.f32 %v273, %v121
    %v275 = vadd.f32 %v274, 1e-05
    %v276 = vrsqrt.pop %v275
    %v277 = vmul.f32 %v265, %v276
    %v279 = vlaneseq
    %v280 = vshrl.u32 %v279, 7
    %v281 = vsub.s32 0, %v280
    %v282 = vrot.slane %v255, %v281
    %v284 = vmul.f32 %v277, %v282
    %v286 = vlaneseq
    %v287 = vshrl.u32 %v286, 7
    %v288 = vsub.s32 0, %v287
    %v289 = vrot.slane %v256, %v288
    %v291 = vadd.f32 %v284, %v289
    %v292 = vmul.f32 %v291, 0.5
    %v293 = vmul.f32 %v291, 0.70710677
    %v294 = verf.f32.pop %v293
    %v295 = vadd.f32 %v294, 1.0
    %v296 = vmul.f32 %v292, %v295
    %v297 = vpack.c.bf16 %v296, %v296
    %v299 = vunpack.c.l.b16 %v297
    %v300 = vpack.c.b16 %v299, %v299
    %301 = vrot.lane.b32.xlu0 %v300, 96
    %v302 = vpop.permute.xlu0 %301
    %304 = vst.msk [vmem:[%s10] sm:$0xf] %vm253, %v302
    // Predicated region
    $region42: #{att_dual_forward.2} parent=1 // pred_check
      _
    $region43: #{att_dual_forward.2} parent=1 // pred_check_branch
      %306 = sbr.rel (0) target = $region45
    $region44: #{att_dual_forward.2} parent=1 // pred_region
      _
    $region45: #{att_dual_forward.2} parent=1 // pred_fallthru
      _
    // Predicated region
    $region46: #{att_dual_forward.2} parent=1 // pred_check
      _
    $region47: #{att_dual_forward.2} parent=1 // pred_check_branch
      %308 = sbr.rel (0) target = $region49
    $region48: #{att_dual_forward.2} parent=1 // pred_region
      _
    $region49: #{att_dual_forward.2} parent=1 // pred_fallthru
      _
    // Predicated region
    $region50: #{att_dual_forward.2} parent=1 // pred_check
      _
    $region51: #{att_dual_forward.2} parent=1 // pred_check_branch
      %310 = sbr.rel (0) target = $region53
    $region52: #{att_dual_forward.2} parent=1 // pred_region
      _
    $region53: #{att_dual_forward.2} parent=1 // pred_fallthru
      _
    // Predicated region
    $region54: #{att_dual_forward.2} parent=1 // pred_check
      _
    $region55: #{att_dual_forward.2} parent=1 // pred_check_branch
      %312 = sbr.rel (0) target = $region57
    $region56: #{att_dual_forward.2} parent=1 // pred_region
      _
    $region57: #{att_dual_forward.2} parent=1 // pred_fallthru
      _
    %313 = vsyncpa [#allocation3], 1

</llo_original>
